<compile_context>
chip_gen: v7x
topology: tpu7x:2x2x1
jax: 0.10.0
libtpu: 0.0.40
codegen_flags: <defaults>
</compile_context>

<pallas_src>
import functools

import jax
import jax.numpy as jnp
from jax.experimental import pallas as pl
from jax.experimental.pallas import tpu as pltpu


def _round_up(a: int, b: int) -> int:
    return ((a + b - 1) // b) * b


def _default_vmem_budget_bytes() -> int:
    """Generation-aware VMEM budget (always below physical VMEM, with headroom)."""
    mib = 1024 * 1024
    cap = 64 * mib  # conservative fallback (v7x-sized VMEM)
    try:
        info = pltpu.get_tpu_info()
        cap = int(getattr(info, "vmem_capacity_bytes", cap) or cap)
    except Exception:
        cap = 64 * mib
    if cap >= 100 * mib:            # v5e / v6e: 128 MiB per TensorCore
        return 96 * mib
    # v7x-sized (64 MiB per TC) or unknown: leave headroom for compiler scratch
    return max(24 * mib, min(cap - 8 * mib, 56 * mib))


def adapter_kernel(x_ref, wd_ref, wu_ref, o_ref, *, d_chunks):
    """One row tile: fused down-proj -> identity -> up-proj (chunked) -> residual add."""
    x = x_ref[...]                                                    # (tm, D)
    # down projection (MXU), f32 accumulation; R_pad is lane-dense (128k)
    h = jnp.dot(x, wd_ref[...], preferred_element_type=jnp.float32)  # (tm, R_pad)
    # activation = Identity (nn.Identity in the reference module)
    h = h.astype(wu_ref.dtype)
    # up projection + residual + store, chunked over D: the f32 intermediate is capped
    # at (tm, chunk); chunk starts are lane (128) multiples so slices stay lane-aligned.
    for start, size in d_chunks:                                      # static Python loop
        up = jnp.dot(h, wu_ref[:, start:start + size],
                     preferred_element_type=jnp.float32)              # (tm, size) f32
        xc = x[:, start:start + size].astype(jnp.float32)
        o_ref[:, start:start + size] = (xc + up).astype(o_ref.dtype)  # residual in f32


@functools.partial(jax.jit, static_argnames=("tm", "vmem_budget_bytes", "d_chunk"))
def adapter_forward(x, w_down, w_up, *, tm=1024, vmem_budget_bytes=None, d_chunk=2048):
    """x: (B, S, D) ; w_down: (D, R) ; w_up: (R, D)  ->  (B, S, D)."""
    B, S, D = x.shape
    R = w_down.shape[1]
    M = B * S

    lane = 128
    x_itemsize = jnp.dtype(x.dtype).itemsize
    w_itemsize = jnp.dtype(w_down.dtype).itemsize
    sublane = max(8, 32 // max(1, x_itemsize))        # 8 f32, 16 bf16, 32 int8/fp8

    # Lane-dense rank: LoRA ranks (8..64) would otherwise force masked MXU operand
    # layouts and strided resident-weight DMA.  Zero padding is semantically neutral.
    R_pad = _round_up(R, lane)

    # D chunking for the up-projection (chunk is a multiple of 128).
    chunk = max(lane, min(int(d_chunk), _round_up(D, lane)))
    d_chunks = tuple((c, min(chunk, D - c)) for c in range(0, D, chunk))

    if vmem_budget_bytes is None:
        vmem_budget_bytes = _default_vmem_budget_bytes()
    budget = int(vmem_budget_bytes)

    # --- VMEM model: pipeline buffers + in-kernel intermediates -----------------------
    # per row: x-in + out (double-buffered), h (f32 + cast to weight dtype),
    #          up chunk + residual chunk in f32
    per_row = (2 * 2 * D * x_itemsize
               + R_pad * 4 + R_pad * w_itemsize
               + 2 * chunk * 4)
    # fixed: both resident weights (double-buffered) + compiler scratch headroom
    fixed = 2 * 2 * D * R_pad * w_itemsize + 2 * 1024 * 1024

    t_max = (budget - fixed) // per_row
    tm_eff = min(int(tm), _round_up(M, sublane))
    if t_max < tm_eff:
        tm_eff = max(sublane, int(t_max))
    tm_eff = max(sublane, (tm_eff // sublane) * sublane)

    # Keep >= 2 row tiles so both TensorCores get work on v7x megacore ("parallel" axis).
    if M > sublane and pl.cdiv(M, tm_eff) < 2:
        tm_eff = max(sublane, _round_up(pl.cdiv(M, 2), sublane))

    grid = (pl.cdiv(M, tm_eff),)

    # --- only the tiny weights are padded; x / out stay unpadded ----------------------
    x2d = x.reshape(M, D)
    wd = w_down if R_pad == R else jnp.pad(w_down, ((0, 0), (0, R_pad - R)))
    wu = w_up if R_pad == R else jnp.pad(w_up, ((0, R_pad - R), (0, 0)))

    cost = pl.CostEstimate(
        flops=4 * M * D * R_pad,
        transcendentals=0,
        bytes_accessed=2 * M * D * x_itemsize + 2 * D * R_pad * w_itemsize,
    )

    out = pl.pallas_call(
        functools.partial(adapter_kernel, d_chunks=d_chunks),
        out_shape=jax.ShapeDtypeStruct((M, D), x.dtype),
        grid_spec=pltpu.PrefetchScalarGridSpec(
            num_scalar_prefetch=0,
            grid=grid,
            in_specs=[
                pl.BlockSpec((tm_eff, D), lambda i: (i, 0)),   # x row tile (ragged tail masked)
                pl.BlockSpec((D, R_pad), lambda i: (0, 0)),    # w_down, resident
                pl.BlockSpec((R_pad, D), lambda i: (0, 0)),    # w_up,   resident
            ],
            out_specs=pl.BlockSpec((tm_eff, D), lambda i: (i, 0)),
        ),
        compiler_params=pltpu.CompilerParams(
            dimension_semantics=("parallel",),   # sharded across TCs on v7x megacore
            vmem_limit_bytes=int(budget),
        ),
        cost_estimate=cost,
    )(x2d, wd, wu)

    return out.reshape(B, S, D)


def reference_forward(x, w_down, w_up):
    """Pure-JAX reference mirroring the PyTorch module."""
    h = jnp.einsum("bsd,dr->bsr", x, w_down)
    up = jnp.einsum("bsr,rd->bsd", h, w_up)
    return x + up


if __name__ == "__main__":
    key = jax.random.PRNGKey(0)
    kx, kd, ku, kx2, kd2, ku2 = jax.random.split(key, 6)

    # --- small shapes consistent with the module: batch=2, seq=8, hidden=32, rank=8 ---
    B, S, D, R = 2, 8, 32, 8
    x = jax.random.normal(kx, (B, S, D), dtype=jnp.float32)
    w_down = (jax.random.uniform(kd, (D, R), dtype=jnp.float32) - 0.5) * (2.0 / jnp.sqrt(D))
    w_up = (jax.random.uniform(ku, (R, D), dtype=jnp.float32) - 0.5) * (2.0 / jnp.sqrt(R))

    ref = reference_forward(x, w_down, w_up)
    out = jax.block_until_ready(adapter_forward(x, w_down, w_up))
    assert out.shape == (B, S, D)
    assert jnp.allclose(out, ref, atol=1e-5, rtol=1e-5), "f32 mismatch vs reference"

    # bf16-traffic path (production mode: halves HBM bytes for x/out); loose tolerance
    # because the rank-R intermediate is rounded to bf16 (residual itself is f32).
    out_bf16 = jax.block_until_ready(
        adapter_forward(x.astype(jnp.bfloat16),
                        w_down.astype(jnp.bfloat16),
                        w_up.astype(jnp.bfloat16)))
    assert out_bf16.shape == (B, S, D)
    assert jnp.allclose(out_bf16.astype(jnp.float32), ref, atol=5e-2, rtol=5e-2), \
        "bf16 mismatch vs reference"

    # --- medium shape: exercises no-pad D, ragged M tail, chunked-D, megacore split ---
    B2, S2, D2, R2 = 2, 100, 2304, 16   # M=200 (not a tile multiple), D % 128 == 0
    x2 = jax.random.normal(kx2, (B2, S2, D2), dtype=jnp.float32)
    w_down2 = (jax.random.uniform(kd2, (D2, R2), dtype=jnp.float32) - 0.5) * (2.0 / jnp.sqrt(D2))
    w_up2 = (jax.random.uniform(ku2, (R2, D2), dtype=jnp.float32) - 0.5) * (2.0 / jnp.sqrt(R2))

    ref2 = reference_forward(x2, w_down2, w_up2)
    out2 = jax.block_until_ready(adapter_forward(x2, w_down2, w_up2))
    assert out2.shape == (B2, S2, D2)
    # tolerance accommodates TPU default-precision f32 matmuls over the wide contraction
    assert jnp.allclose(out2, ref2, atol=5e-2, rtol=5e-2), "medium f32 mismatch vs reference"

    print("KERNEL_OK")
</pallas_src>

<mosaic_0001>
module attributes {stable_mosaic.version = 11 : i64} {
  func.func @adapter_kernel(%arg0: i32, %arg1: memref<8x32xf32, #tpu.memory_space<vmem>>, %arg2: memref<32x128xf32, #tpu.memory_space<vmem>>, %arg3: memref<128x32xf32, #tpu.memory_space<vmem>>, %arg4: memref<8x32xf32, #tpu.memory_space<vmem>>) attributes {dimension_semantics = [#tpu.dimension_semantics<parallel>], iteration_bounds = array<i64: 2>, scalar_prefetch = 0 : i64, scratch_operands = 0 : i64, tpu.core_type = #tpu.core_type<tc>, window_params = [{transform_indices = @transform_0, window_bounds = array<i64: 8, 32>}, {pipeline_mode = #tpu.pipeline_mode<synchronous>, transform_indices = @transform_1, window_bounds = array<i64: 32, 128>}, {pipeline_mode = #tpu.pipeline_mode<synchronous>, transform_indices = @transform_2, window_bounds = array<i64: 128, 32>}, {transform_indices = @transform_3, window_bounds = array<i64: 8, 32>}]} {
    %c0 = arith.constant 0 : index
    %c0_0 = arith.constant 0 : index
    %0 = vector.load %arg1[%c0, %c0_0] : memref<8x32xf32, #tpu.memory_space<vmem>>, vector<8x32xf32>
    %c0_1 = arith.constant 0 : index
    %c0_2 = arith.constant 0 : index
    %1 = vector.load %arg2[%c0_1, %c0_2] : memref<32x128xf32, #tpu.memory_space<vmem>>, vector<32x128xf32>
    %cst = arith.constant dense<0.000000e+00> : vector<8x128xf32>
    %2 = tpu.matmul %0, %1, %cst {dimension_numbers = #tpu.dot_dimension_numbers<[1], [0], [0], [1], [0, 0, 1, 1], [], []>} : vector<8x32xf32>, vector<32x128xf32>, vector<8x128xf32> -> vector<8x128xf32>
    %c0_3 = arith.constant 0 : index
    %c0_4 = arith.constant 0 : index
    %3 = vector.load %arg3[%c0_3, %c0_4] : memref<128x32xf32, #tpu.memory_space<vmem>>, vector<128x32xf32>
    %cst_5 = arith.constant dense<0.000000e+00> : vector<8x32xf32>
    %4 = tpu.matmul %2, %3, %cst_5 {dimension_numbers = #tpu.dot_dimension_numbers<[1], [0], [0], [1], [0, 0, 1, 1], [], []>} : vector<8x128xf32>, vector<128x32xf32>, vector<8x32xf32> -> vector<8x32xf32>
    %5 = arith.addf %0, %4 : vector<8x32xf32>
    %c0_6 = arith.constant 0 : index
    %c0_7 = arith.constant 0 : index
    %6 = vector.load %arg4[%c0_6, %c0_7] : memref<8x32xf32, #tpu.memory_space<vmem>>, vector<8x32xf32>
    tpu.vector_store %arg4[%c0_6, %c0_7], %5 {strides = array<i32>} : memref<8x32xf32, #tpu.memory_space<vmem>>, vector<8x32xf32>,
    return
  }
  func.func @transform_0(%arg0: i32) -> (i32, i32) {
    %c0_i32 = arith.constant 0 : i32
    %c0_i32_0 = arith.constant 0 : i32
    return %arg0, %c0_i32 : i32, i32
  }
  func.func @transform_1(%arg0: i32) -> (i32, i32) {
    %c0_i32 = arith.constant 0 : i32
    %c0_i32_0 = arith.constant 0 : i32
    %c0_i32_1 = arith.constant 0 : i32
    return %c0_i32, %c0_i32_0 : i32, i32
  }
  func.func @transform_2(%arg0: i32) -> (i32, i32) {
    %c0_i32 = arith.constant 0 : i32
    %c0_i32_0 = arith.constant 0 : i32
    %c0_i32_1 = arith.constant 0 : i32
    return %c0_i32, %c0_i32_0 : i32, i32
  }
  func.func @transform_3(%arg0: i32) -> (i32, i32) {
    %c0_i32 = arith.constant 0 : i32
    %c0_i32_0 = arith.constant 0 : i32
    return %arg0, %c0_i32 : i32, i32
  }
}

</mosaic_0001>

<llo_original>
// kernel: adapter_forward.1
$region0: #{adapter_forward.1}
  #allocation0 [shape = 'u32[]', space=smem, size = 0x4, offset = 0x4, fixed_abs, tag = 'smem constant byte address 0x4 - core index']
  #allocation1 [shape = 'u32[144,128]{1,0:T(1,128)}', space=vmem, size = 0x12000, scoped, tag = 'internal scratch']
  %s0 = inlined_call_operand.vmem [shape: f32[16,32], index: 0, kind: input, shape index: {}]
  %s1 = inlined_call_operand.vmem [shape: f32[32,128], index: 1, kind: input, shape index: {}]
  %s2 = inlined_call_operand.vmem [shape: f32[128,32], index: 2, kind: input, shape index: {}]
  %s3 = inlined_call_operand.hbm [shape: f32[16,32], index: 3, kind: output, shape index: {}]
  %s4 = sld [smem:[#allocation0]]
  $region45: #{adapter_forward.1} parent=0
    _
  %s6 = ssub.s32 1, %s4
  %s7 = scalar_select 0, %s6, %s4
  $region1: #{adapter_forward.1} parent=0
    #allocation2 [shape = 'u8[8192]{0}', space=vmem, size = 0x2000, scoped, tag = 'output window, operand 0']
    #allocation3 [shape = 's32[2]{0}', space=sflag, size = 0x8, scoped, tag = 'scoped memory for adapter_forward.1']
    %8 = vsyncpa [#allocation3], 0
    %s9 = scalar_lea.sflag [#allocation3], 1
    %10 = vsyncpa %s9, 0
    loop: start=0, step=1, limit=4
    $region2: #{adapter_forward.1} parent=1 // loop_pre_header
      _
    $region3: #{adapter_forward.1} parent=1 // loop_header
      %s12 = sphi 0, %s16
      %p13 = scmp.ge.s32.totalorder %s12, 4
      %s22 = sphi 0, %s24
      %s25 = sphi 0, %s22
      %s26 = sphi 0, %s25
      %s42 = sphi 0, %s26
      %s46 = sphi 0, %s46
      %s48 = sphi 0, %s46
      %s49 = sphi 0, %s48
      %s63 = sphi 0, %s49
      %s67 = sphi 0, %s67
      %s69 = sphi 0, %s67
      %s70 = sphi 0, %s69
      %s84 = sphi 0, %s70
      %s90 = sphi 0, %s92
      %s93 = sphi 0, %s90
      %s94 = sphi 0, %s93
      %s110 = sphi 0, %s94
    $region4: #{adapter_forward.1} parent=1 // loop_header_branch
      %15 = sbr.rel (%p13) target = $region8
    $region5: #{adapter_forward.1} parent=1 // loop_body
      %s17 = ssub.s32 %s12, 1
      %s18 = ssub.s32 %s12, 2
      %s19 = sadd.s32 %s12, 1
      %s20 = ssub.s32 %s12, %s19
      %p21 = scmp.eq.s32.totalorder %s20, 0
      %s23 = sadd.s32 %s22, 1
      %s24 = scalar_select %p21, %s22, %s23
      %p27 = pneg %p21
      %p28 = scmp.eq.s32.totalorder %s12, 1
      %p29 = por %p27, %p28
      %p30 = scmp.ne.s32.totalorder %s22, %s25
      %p31 = scmp.eq.s32.totalorder %s12, 0
      %p32 = por %p30, %p31
      %p33 = scmp.ne.s32.totalorder %s22, %s25
      %p34 = scmp.eq.s32.totalorder %s17, 1
      %p35 = por %p33, %p34
      %p36 = scmp.ne.s32.totalorder %s25, %s26
      %p37 = scmp.eq.s32.totalorder %s17, 0
      %p38 = por %p36, %p37
      %p39 = scmp.ne.s32.totalorder %s25, %s26
      %p40 = scmp.eq.s32.totalorder %s18, 1
      %p41 = por %p39, %p40
      %p43 = scmp.ne.s32.totalorder %s26, %s42
      %p44 = scmp.eq.s32.totalorder %s18, 0
      %p45 = por %p43, %p44
      %s47 = sadd.s32 %s46, 1
      %p50 = scmp.eq.s32.totalorder %s12, 1
      %p51 = scmp.ne.s32.totalorder %s46, %s48
      %p52 = scmp.eq.s32.totalorder %s12, 0
      %p53 = por %p51, %p52
      %p54 = scmp.ne.s32.totalorder %s46, %s48
      %p55 = scmp.eq.s32.totalorder %s17, 1
      %p56 = por %p54, %p55
      %p57 = scmp.ne.s32.totalorder %s48, %s49
      %p58 = scmp.eq.s32.totalorder %s17, 0
      %p59 = por %p57, %p58
      %p60 = scmp.ne.s32.totalorder %s48, %s49
      %p61 = scmp.eq.s32.totalorder %s18, 1
      %p62 = por %p60, %p61
      %p64 = scmp.ne.s32.totalorder %s49, %s63
      %p65 = scmp.eq.s32.totalorder %s18, 0
      %p66 = por %p64, %p65
      %s68 = sadd.s32 %s67, 1
      %p71 = scmp.eq.s32.totalorder %s12, 1
      %p72 = scmp.ne.s32.totalorder %s67, %s69
      %p73 = scmp.eq.s32.totalorder %s12, 0
      %p74 = por %p72, %p73
      %p75 = scmp.ne.s32.totalorder %s67, %s69
      %p76 = scmp.eq.s32.totalorder %s17, 1
      %p77 = por %p75, %p76
      %p78 = scmp.ne.s32.totalorder %s69, %s70
      %p79 = scmp.eq.s32.totalorder %s17, 0
      %p80 = por %p78, %p79
      %p81 = scmp.ne.s32.totalorder %s69, %s70
      %p82 = scmp.eq.s32.totalorder %s18, 1
      %p83 = por %p81, %p82
      %p85 = scmp.ne.s32.totalorder %s70, %s84
      %p86 = scmp.eq.s32.totalorder %s18, 0
      %p87 = por %p85, %p86
      %s88 = ssub.s32 %s12, %s19
      %p89 = scmp.eq.s32.totalorder %s88, 0
      %s91 = sadd.s32 %s90, 1
      %s92 = scalar_select %p89, %s90, %s91
      %p95 = pneg %p89
      %p96 = scmp.eq.s32.totalorder %s12, 1
      %p97 = por %p95, %p96
      %p98 = scmp.ne.s32.totalorder %s90, %s93
      %p99 = scmp.eq.s32.totalorder %s12, 0
      %p100 = por %p98, %p99
      %p101 = scmp.ne.s32.totalorder %s90, %s93
      %p102 = scmp.eq.s32.totalorder %s17, 1
      %p103 = por %p101, %p102
      %p104 = scmp.ne.s32.totalorder %s93, %s94
      %p105 = scmp.eq.s32.totalorder %s17, 0
      %p106 = por %p104, %p105
      %p107 = scmp.ne.s32.totalorder %s93, %s94
      %p108 = scmp.eq.s32.totalorder %s18, 1
      %p109 = por %p107, %p108
      %p111 = scmp.ne.s32.totalorder %s94, %s110
      %p112 = scmp.eq.s32.totalorder %s18, 0
      %p113 = por %p111, %p112
      %p114 = scmp.le.s32.totalorder 1, %s12
      %p115 = scmp.lt.s32.totalorder %s12, 3
      %p116 = pnand %p114, %p115
      %p117 = pneg %p116
      // Predicated region
      $region9: #{adapter_forward.1} parent=5 // pred_check
        _
      $region10: #{adapter_forward.1} parent=5 // pred_check_branch
        %119 = sbr.rel (%p116) target = $region12
      $region11: #{adapter_forward.1} parent=5 // pred_region
        %s120 = ssub.s32 %s12, 1
        // Predicated region
        $region13: #{adapter_forward.1} parent=11 // pred_check
          %p121 = pneg %p59
        $region14: #{adapter_forward.1} parent=11 // pred_check_branch
          %123 = sbr.rel (%p121) target = $region16
        $region15: #{adapter_forward.1} parent=11 // pred_region
          _
        $region16: #{adapter_forward.1} parent=11 // pred_fallthru
          _
        // Predicated region
        $region17: #{adapter_forward.1} parent=11 // pred_check
          %p124 = pneg %p80
        $region18: #{adapter_forward.1} parent=11 // pred_check_branch
          %126 = sbr.rel (%p124) target = $region20
        $region19: #{adapter_forward.1} parent=11 // pred_region
          _
        $region20: #{adapter_forward.1} parent=11 // pred_fallthru
          _
      $region12: #{adapter_forward.1} parent=5 // pred_fallthru
        _
      %p127 = scmp.lt.s32.totalorder %s12, 2
      // Predicated region
      $region21: #{adapter_forward.1} parent=5 // pred_check
        %p128 = pneg %p127
      $region22: #{adapter_forward.1} parent=5 // pred_check_branch
        %130 = sbr.rel (%p128) target = $region24
      $region23: #{adapter_forward.1} parent=5 // pred_region
        // Predicated region
        $region25: #{adapter_forward.1} parent=23 // pred_check
          %p131 = pneg %p32
        $region26: #{adapter_forward.1} parent=23 // pred_check_branch
          %133 = sbr.rel (%p131) target = $region28
        $region27: #{adapter_forward.1} parent=23 // pred_region
          %p134 = scmp.lt.s32.totalorder %s12, 1
          %s135 = scalar_select %p134, %s12, 1
          %s136 = smul.addr %s135, 8
          %s137 = scalar_lea.vmem %s0, %s136
        $region28: #{adapter_forward.1} parent=23 // pred_fallthru
          _
      $region24: #{adapter_forward.1} parent=5 // pred_fallthru
        _
      %p138 = scmp.le.s32.totalorder 1, %s12
      %p139 = scmp.lt.s32.totalorder %s12, 3
      %p140 = pnand %p138, %p139
      %p141 = pneg %p140
      // Predicated region
      $region29: #{adapter_forward.1} parent=5 // pred_check
        _
      $region30: #{adapter_forward.1} parent=5 // pred_check_branch
        %143 = sbr.rel (%p140) target = $region32
      $region31: #{adapter_forward.1} parent=5 // pred_region
        %s144 = ssub.s32 %s12, 1
        %p145 = scmp.lt.s32.totalorder %s17, 1
        %s146 = scalar_select %p145, %s17, 1
        %s147 = smul.addr %s146, 8
        %s148 = scalar_lea.vmem %s0, %s147
        %p149 = pneg %p38
        %p150 = pneg %p35
        %p151 = pneg %p59
        %p152 = pneg %p56
        %p153 = pneg %p80
        %p154 = pneg %p77
        %p155 = pneg %p106
        %p156 = pneg %p103
        %s157 = sand.u32 %s93, 1
        %s158 = scalar_lea.sflag [#allocation3], %s157
        %s159 = sand.u32 %s93, 1
        %s160 = smul.addr %s159, 8
        %s161 = scalar_lea.vmem [#allocation2], %s160
        %p162 = scmp.lt.s32.totalorder %s17, 1
        %s163 = scalar_select %p162, %s17, 1
        %s164 = smul.addr %s163, 8
        %s165 = scalar_lea.vmem %s0, %s164
        %v166 = vld [vmem:[%s165] sm:$0xff]
        %v167 = vld [vmem:[%s1] sm:$0xff]
        %v168 = vld [vmem:[%s1 + $0x8] sm:$0xff]
        %v169 = vld [vmem:[%s1 + $0x10] sm:$0xff]
        %v170 = vld [vmem:[%s1 + $0x18] sm:$0xff]
        %vm171 = vcmask 261120
        %v173 = vsel %vm171, %v166, 0
        %175 = vmatprep.subr.mxu0 0.0
        %176 = vmatpush1.msra.mxu0 %v167
        %177 = vmatprep.subr.mxu0 0.0
        %178 = vmatpush1.msra.mxu0 %v168
        %179 = vmatprep.subr.mxu0 0.0
        %180 = vmatpush1.msra.mxu0 %v169
        %181 = vmatprep.subr.mxu0 0.0
        %182 = vmatpush1.msra.mxu0 %v170
        %183 = vmatprep.subr.mxu0 0.0
        %184 = vmatpush1.msra.mxu0 0.0
        %185 = vmatprep.subr.mxu0 0.0
        %186 = vmatpush1.msra.mxu0 0.0
        %187 = vmatprep.subr.mxu0 0.0
        %188 = vmatpush1.msra.mxu0 0.0
        %189 = vmatprep.subr.mxu0 0.0
        %190 = vmatpush1.msra.mxu0 0.0
        %191 = vmatprep.subr.mxu0 0.0
        %192 = vmatpush1.msra.mxu0 0.0
        %193 = vmatprep.subr.mxu0 0.0
        %194 = vmatpush1.msra.mxu0 0.0
        %195 = vmatprep.subr.mxu0 0.0
        %196 = vmatpush1.msra.mxu0 0.0
        %197 = vmatprep.subr.mxu0 0.0
        %198 = vmatpush1.msra.mxu0 0.0
        %199 = vmatprep.subr.mxu0 0.0
        %200 = vmatpush1.msra.mxu0 0.0
        %201 = vmatprep.subr.mxu0 0.0
        %202 = vmatpush1.msra.mxu0 0.0
        %203 = vmatprep.subr.mxu0 0.0
        %204 = vmatpush1.msra.mxu0 0.0
        %205 = vmatprep.subr.mxu0 0.0
        %206 = vmatpush1.msra.mxu0 0.0
        %207 = vmatprep.subr.mxu0 0.0
        %208 = vmatpush1.msra.mxu0 0.0
        %209 = vmatprep.subr.mxu0 0.0
        %210 = vmatpush1.msra.mxu0 0.0
        %211 = vmatprep.subr.mxu0 0.0
        %212 = vmatpush1.msra.mxu0 0.0
        %213 = vmatprep.subr.mxu0 0.0
        %214 = vmatpush1.msra.mxu0 0.0
        %215 = vmatprep.subr.mxu0 0.0
        %216 = vmatpush1.msra.mxu0 0.0
        %217 = vmatprep.subr.mxu0 0.0
        %218 = vmatpush1.msra.mxu0 0.0
        %219 = vmatprep.subr.mxu0 0.0
        %220 = vmatpush1.msra.mxu0 0.0
        %221 = vmatprep.subr.mxu0 0.0
        %222 = vmatpush1.msra.mxu0 0.0
        %223 = vmatprep.subr.mxu0 0.0
        %224 = vmatpush1.msra.mxu0 0.0
        %225 = vmatprep.subr.mxu0 0.0
        %226 = vmatpush1.msra.mxu0 0.0
        %227 = vmatprep.subr.mxu0 0.0
        %228 = vmatpush1.msra.mxu0 0.0
        %229 = vmatprep.subr.mxu0 0.0
        %230 = vmatpush1.msra.mxu0 0.0
        %231 = vmatprep.subr.mxu0 0.0
        %232 = vmatpush1.msra.mxu0 0.0
        %233 = vmatprep.subr.mxu0 0.0
        %234 = vmatpush1.msra.mxu0 0.0
        %235 = vmatprep.subr.mxu0 0.0
        %236 = vmatpush1.msra.mxu0 0.0
        %237 = vmatprep.subr.mxu0 0.0
        %238 = vmatpush1.msra.mxu0 0.0
        %239 = vmatprep.mubr.f32.mxu0 0.0
        %240 = vmatmul.mubr.f32.gmra.mrb[0].mxu0 %v173
        %v241 = vpop.f32.mrb[0].mxu0
        %v242 = vadd.f32 0.0, %v241
        %v243 = vpop.f32.mrb[0].mxu0
        %244 = vdwg.mxu0
        %v245 = vld [vmem:[%s2] sm:$0xff]
        %v246 = vld [vmem:[%s2 + $0x8] sm:$0xff]
        %v247 = vld [vmem:[%s2 + $0x10] sm:$0xff]
        %v248 = vld [vmem:[%s2 + $0x18] sm:$0xff]
        %v249 = vld [vmem:[%s2 + $0x20] sm:$0xff]
        %v250 = vld [vmem:[%s2 + $0x28] sm:$0xff]
        %v251 = vld [vmem:[%s2 + $0x30] sm:$0xff]
        %v252 = vld [vmem:[%s2 + $0x38] sm:$0xff]
        %v253 = vld [vmem:[%s2 + $0x40] sm:$0xff]
        %v254 = vld [vmem:[%s2 + $0x48] sm:$0xff]
        %v255 = vld [vmem:[%s2 + $0x50] sm:$0xff]
        %v256 = vld [vmem:[%s2 + $0x58] sm:$0xff]
        %v257 = vld [vmem:[%s2 + $0x60] sm:$0xff]
        %v258 = vld [vmem:[%s2 + $0x68] sm:$0xff]
        %v259 = vld [vmem:[%s2 + $0x70] sm:$0xff]
        %v260 = vld [vmem:[%s2 + $0x78] sm:$0xff]
        %261 = vmatprep.subr.mxu0 0.0
        %262 = vmatpush1.msra.mxu0 %v245
        %263 = vmatprep.subr.mxu0 0.0
        %264 = vmatpush1.msra.mxu0 %v246
        %265 = vmatprep.subr.mxu0 0.0
        %266 = vmatpush1.msra.mxu0 %v247
        %267 = vmatprep.subr.mxu0 0.0
        %268 = vmatpush1.msra.mxu0 %v248
        %269 = vmatprep.subr.mxu0 0.0
        %270 = vmatpush1.msra.mxu0 %v249
        %271 = vmatprep.subr.mxu0 0.0
        %272 = vmatpush1.msra.mxu0 %v250
        %273 = vmatprep.subr.mxu0 0.0
        %274 = vmatpush1.msra.mxu0 %v251
        %275 = vmatprep.subr.mxu0 0.0
        %276 = vmatpush1.msra.mxu0 %v252
        %277 = vmatprep.subr.mxu0 0.0
        %278 = vmatpush1.msra.mxu0 %v253
        %279 = vmatprep.subr.mxu0 0.0
        %280 = vmatpush1.msra.mxu0 %v254
        %281 = vmatprep.subr.mxu0 0.0
        %282 = vmatpush1.msra.mxu0 %v255
        %283 = vmatprep.subr.mxu0 0.0
        %284 = vmatpush1.msra.mxu0 %v256
        %285 = vmatprep.subr.mxu0 0.0
        %286 = vmatpush1.msra.mxu0 %v257
        %287 = vmatprep.subr.mxu0 0.0
        %288 = vmatpush1.msra.mxu0 %v258
        %289 = vmatprep.subr.mxu0 0.0
        %290 = vmatpush1.msra.mxu0 %v259
        %291 = vmatprep.subr.mxu0 0.0
        %292 = vmatpush1.msra.mxu0 %v260
        %293 = vmatprep.subr.mxu0 0.0
        %294 = vmatpush1.msra.mxu0 0.0
        %295 = vmatprep.subr.mxu0 0.0
        %296 = vmatpush1.msra.mxu0 0.0
        %297 = vmatprep.subr.mxu0 0.0
        %298 = vmatpush1.msra.mxu0 0.0
        %299 = vmatprep.subr.mxu0 0.0
        %300 = vmatpush1.msra.mxu0 0.0
        %301 = vmatprep.subr.mxu0 0.0
        %302 = vmatpush1.msra.mxu0 0.0
        %303 = vmatprep.subr.mxu0 0.0
        %304 = vmatpush1.msra.mxu0 0.0
        %305 = vmatprep.subr.mxu0 0.0
        %306 = vmatpush1.msra.mxu0 0.0
        %307 = vmatprep.subr.mxu0 0.0
        %308 = vmatpush1.msra.mxu0 0.0
        %309 = vmatprep.subr.mxu0 0.0
        %310 = vmatpush1.msra.mxu0 0.0
        %311 = vmatprep.subr.mxu0 0.0
        %312 = vmatpush1.msra.mxu0 0.0
        %313 = vmatprep.subr.mxu0 0.0
        %314 = vmatpush1.msra.mxu0 0.0
        %315 = vmatprep.subr.mxu0 0.0
        %316 = vmatpush1.msra.mxu0 0.0
        %317 = vmatprep.subr.mxu0 0.0
        %318 = vmatpush1.msra.mxu0 0.0
        %319 = vmatprep.subr.mxu0 0.0
        %320 = vmatpush1.msra.mxu0 0.0
        %321 = vmatprep.subr.mxu0 0.0
        %322 = vmatpush1.msra.mxu0 0.0
        %323 = vmatprep.subr.mxu0 0.0
        %324 = vmatpush1.msra.mxu0 0.0
        %325 = vmatprep.mubr.f32.mxu0 0.0
        %326 = vmatmul.mubr.f32.gmra.mrb[0].mxu0 %v242
        %v327 = vpop.f32.mrb[0].mxu0
        %v328 = vadd.f32 0.0, %v327
        %v329 = vpop.f32.mrb[0].mxu0
        %330 = vdwg.mxu0
        %v331 = vadd.f32 %v166, %v328
        %332 = vst.msk [vmem:[%s161] sm:$0xff] %vm171, %v331
        %s333 = sand.u32 %s93, 1
        %s334 = scalar_lea.sflag [#allocation3], %s333
        %s335 = sand.u32 %s93, 1
        %s336 = smul.addr %s335, 8
        %s337 = scalar_lea.vmem [#allocation2], %s336
        // Predicated region
        $region33: #{adapter_forward.1} parent=31 // pred_check
          %p338 = pneg %p103
        $region34: #{adapter_forward.1} parent=31 // pred_check_branch
          %340 = sbr.rel (%p338) target = $region36
        $region35: #{adapter_forward.1} parent=31 // pred_region
          %s342 = ssub.s32 128, 128
          %343 = vsyncadd %s334, %s342
          %s344 = smul.addr %s17, 128
          %s345 = scalar_lea.hbm %s3, %s344
          %s347 = sshll.u32 %s337, 4
          %s348 = int_to_ptr.vmem [resolvable:$true] %s347
          %350 = dma.vmem_to_hbm [thread:$0]  %s348, 128, %s345, %s334
        $region36: #{adapter_forward.1} parent=31 // pred_fallthru
          _
      $region32: #{adapter_forward.1} parent=5 // pred_fallthru
        _
      %p351 = scmp.le.s32.totalorder 2, %s12
      // Predicated region
      $region37: #{adapter_forward.1} parent=5 // pred_check
        %p352 = pneg %p351
      $region38: #{adapter_forward.1} parent=5 // pred_check_branch
        %354 = sbr.rel (%p352) target = $region40
      $region39: #{adapter_forward.1} parent=5 // pred_region
        %s355 = ssub.s32 %s12, 2
        // Predicated region
        $region41: #{adapter_forward.1} parent=39 // pred_check
          %p356 = pneg %p109
        $region42: #{adapter_forward.1} parent=39 // pred_check_branch
          %358 = sbr.rel (%p356) target = $region44
        $region43: #{adapter_forward.1} parent=39 // pred_region
          %s359 = sand.u32 %s94, 1
          %s360 = scalar_lea.sflag [#allocation3], %s359
          %s361 = sand.u32 %s94, 1
          %s362 = smul.addr %s361, 8
          %s363 = scalar_lea.vmem [#allocation2], %s362
          %364 = dma.done %s360, 128
        $region44: #{adapter_forward.1} parent=39 // pred_fallthru
          _
      $region40: #{adapter_forward.1} parent=5 // pred_fallthru
        _
    $region6: #{adapter_forward.1} parent=1 // loop_footer
      %s16 = sadd.s32 1, %s12
    $region7: #{adapter_forward.1} parent=1 // loop_footer_branch
      %11 = sbr.rel target = $region3
    $region8: #{adapter_forward.1} parent=1 // loop_exit
      _
    %365 = vsyncpa [#allocation3], 1
    %s366 = scalar_lea.sflag [#allocation3], 1
    %367 = vsyncpa %s366, 1

</llo_original>
